<compile_context>
chip_gen: v6e
topology: v6e:2x2x1
jax: 0.10.0
libtpu: 0.0.40
codegen_flags: <defaults>
</compile_context>

<pallas_src>
import functools

import jax
import jax.numpy as jnp
from jax import lax
from jax.experimental import pallas as pl
from jax.experimental.pallas import tpu as pltpu

EPS = 1e-5
_F32 = 4  # bytes per f32


# -----------------------------------------------------------------------------
# VMEM budget / tiling helpers
# -----------------------------------------------------------------------------
def _vmem_budget_bytes():
    """Generation-aware VMEM budget (v5e/v6e: 128 MiB physical, v7x: 64 MiB)."""
    default = 64 * 1024 * 1024
    try:
        cap = int(getattr(pltpu.get_tpu_info(), "vmem_capacity_bytes", default))
    except Exception:  # query unavailable -> conservative default
        cap = default
    # Leave headroom for compiler-internal scratch / spills.
    return max(32 * 1024 * 1024, (cap * 3) // 4)


def _fused_fits(batch, d_in, d_h, d_out, budget):
    """Conservative estimate of VMEM needed by the fully-fused kernel."""
    weights = (d_in * d_h + d_h * d_h + d_h * d_out) * _F32
    small = (4 * d_h + d_out) * _F32
    io = (batch * d_in + batch * d_out) * _F32
    live = 3 * batch * d_h * _F32  # f32 intermediates + bf16 copies headroom
    return 2 * (weights + small + io) + live <= budget


def _pick_tn(batch, k, n, budget, max_tile):
    """Output-feature strip width for the tiled path: multiple of 128, sized so
    resident x + double-buffered (K, tn) weight strip + output tile fit VMEM."""
    if n <= 128:
        return n

    def fits(tn):
        need = (batch * k + 2 * k * tn + 2 * batch * tn + 4 * tn) * _F32
        return need <= budget

    max_t = (min(n, max(128, max_tile)) // 128) * 128
    for t in range(max_t, 127, -128):  # prefer exact divisors (no ragged tail)
        if n % t == 0 and fits(t):
            return t
    for t in range(max_t, 127, -128):  # otherwise cdiv grid masks the tail
        if fits(t):
            return t
    return 128


# -----------------------------------------------------------------------------
# Kernels
# -----------------------------------------------------------------------------
def _bn_relu(h, gamma, beta):
    """Training-mode BatchNorm1d (batch stats, biased var, eps=1e-5) + ReLU.
    Centered two-pass variance in f32 (no E[h^2]-mean^2 cancellation)."""
    mean = jnp.mean(h, axis=0, keepdims=True)
    c = h - mean
    var = jnp.mean(c * c, axis=0, keepdims=True)
    scale = gamma * lax.rsqrt(var + EPS)
    return jnp.maximum(c * scale + beta, 0.0)


def _fused_kernel(x_ref, w1_ref, g1_ref, be1_ref, w2_ref, g2_ref, be2_ref,
                  w3_ref, b3_ref, o_ref):
    """Whole head in one kernel; the [B, H] intermediates never leave VMEM.
    MXU matmuls in bf16 with f32 accumulation; BN/ReLU in f32.
    b1/b2 are omitted: a bias before training-mode BN is exactly cancelled."""
    bf16 = jnp.bfloat16
    h = jnp.dot(x_ref[...].astype(bf16), w1_ref[...].astype(bf16),
                preferred_element_type=jnp.float32)
    h = _bn_relu(h, g1_ref[...], be1_ref[...])
    h = jnp.dot(h.astype(bf16), w2_ref[...].astype(bf16),
                preferred_element_type=jnp.float32)
    h = _bn_relu(h, g2_ref[...], be2_ref[...])
    out = jnp.dot(h.astype(bf16), w3_ref[...].astype(bf16),
                  preferred_element_type=jnp.float32)
    o_ref[...] = (out + b3_ref[...]).astype(o_ref.dtype)


def _linear_bn_relu_kernel(x_ref, w_ref, g_ref, be_ref, o_ref):
    """Tiled fallback: one output-feature strip.  x is fully resident (its block
    index never changes, so it is DMA'd once); the weight strip spans the full
    K axis, so there is no reduction grid axis and no accumulator scratch."""
    bf16 = jnp.bfloat16
    h = jnp.dot(x_ref[...].astype(bf16), w_ref[...].astype(bf16),
                preferred_element_type=jnp.float32)
    o_ref[...] = _bn_relu(h, g_ref[...], be_ref[...]).astype(o_ref.dtype)


def _linear_bias_kernel(x_ref, w_ref, b_ref, o_ref):
    """Tiled fallback final layer: plain linear + bias (no BN -> bias kept)."""
    bf16 = jnp.bfloat16
    h = jnp.dot(x_ref[...].astype(bf16), w_ref[...].astype(bf16),
                preferred_element_type=jnp.float32)
    o_ref[...] = (h + b_ref[...]).astype(o_ref.dtype)


# -----------------------------------------------------------------------------
# pallas_call wrappers
# -----------------------------------------------------------------------------
def _fused_head(x, p, budget):
    batch, d_in = x.shape
    d_h = p["w1"].shape[1]
    d_out = p["w3"].shape[1]
    vmem = pl.BlockSpec(memory_space=pltpu.MemorySpace.VMEM)
    args = (x, p["w1"], p["g1"], p["be1"], p["w2"], p["g2"], p["be2"],
            p["w3"], p["b3"])

    cost = pl.CostEstimate(
        flops=2 * batch * (d_in * d_h + d_h * d_h + d_h * d_out),
        transcendentals=2 * d_h,
        bytes_accessed=_F32 * (batch * d_in + d_in * d_h + d_h * d_h
                               + d_h * d_out + 4 * d_h + d_out + batch * d_out),
    )
    return pl.pallas_call(
        _fused_kernel,
        out_shape=jax.ShapeDtypeStruct((batch, d_out), x.dtype),
        in_specs=[vmem] * len(args),
        out_specs=vmem,
        compiler_params=pltpu.CompilerParams(vmem_limit_bytes=budget),
        cost_estimate=cost,
    )(*args)


def _tiled_layer(kernel, x, w, extras, budget, max_tile):
    batch, k = x.shape
    n = w.shape[1]
    tn = _pick_tn(batch, k, n, budget, max_tile)
    grid = (pl.cdiv(n, tn),)

    in_specs = [
        pl.BlockSpec((batch, k), lambda j: (0, 0)),   # x resident: fetched once
        pl.BlockSpec((k, tn), lambda j: (0, j)),      # weight strip: pipelined DMA
    ] + [pl.BlockSpec((1, tn), lambda j: (0, j)) for _ in extras]

    cost = pl.CostEstimate(
        flops=2 * batch * k * n,
        transcendentals=n,
        bytes_accessed=_F32 * (batch * k + k * n + len(extras) * n + batch * n),
    )
    return pl.pallas_call(
        kernel,
        out_shape=jax.ShapeDtypeStruct((batch, n), x.dtype),
        grid=grid,
        in_specs=in_specs,
        out_specs=pl.BlockSpec((batch, tn), lambda j: (0, j)),
        compiler_params=pltpu.CompilerParams(
            dimension_semantics=("parallel",),
            vmem_limit_bytes=budget,
        ),
        cost_estimate=cost,
    )(x, w, *extras)


@functools.partial(jax.jit, static_argnames=("max_tile", "force_tiled"))
def projection_head(x, params, max_tile=1024, force_tiled=False):
    """x: [B, dim_in] float32.  params: dict (see init_params).

    b1/b2 are intentionally NOT used: they are mathematically cancelled by the
    training-mode BatchNorm that follows each of the first two linears."""
    budget = _vmem_budget_bytes()
    batch, d_in = x.shape
    d_h = params["w1"].shape[1]
    d_out = params["w3"].shape[1]

    if not force_tiled and _fused_fits(batch, d_in, d_h, d_out, budget):
        return _fused_head(x, params, budget)

    # Fallback: per-layer calls (the intermediate h round-trips HBM) when the
    # whole head does not fit the VMEM budget (large dims/batch, small-VMEM v7x).
    h = _tiled_layer(_linear_bn_relu_kernel, x, params["w1"],
                     (params["g1"], params["be1"]), budget, max_tile)
    h = _tiled_layer(_linear_bn_relu_kernel, h, params["w2"],
                     (params["g2"], params["be2"]), budget, max_tile)
    return _tiled_layer(_linear_bias_kernel, h, params["w3"],
                        (params["b3"],), budget, max_tile)


# -----------------------------------------------------------------------------
# Params / reference / test
# -----------------------------------------------------------------------------
def init_params(key, dim_in, dim_hidden, dim_out):
    """Shapes mirror the PyTorch module: linear weights as (in, out); biases and
    BN params as (1, dim) so they are 2-D (TPU-friendly)."""
    ks = jax.random.split(key, 6)

    def linear_init(kw, kb, fan_in, fan_out):
        bound = 1.0 / jnp.sqrt(fan_in)
        w = jax.random.uniform(kw, (fan_in, fan_out), jnp.float32, -bound, bound)
        b = jax.random.uniform(kb, (1, fan_out), jnp.float32, -bound, bound)
        return w, b

    w1, b1 = linear_init(ks[0], ks[1], dim_in, dim_hidden)
    w2, b2 = linear_init(ks[2], ks[3], dim_hidden, dim_hidden)
    w3, b3 = linear_init(ks[4], ks[5], dim_hidden, dim_out)

    return {
        "w1": w1, "b1": b1,
        "g1": jnp.ones((1, dim_hidden), jnp.float32),
        "be1": jnp.zeros((1, dim_hidden), jnp.float32),
        "w2": w2, "b2": b2,
        "g2": jnp.ones((1, dim_hidden), jnp.float32),
        "be2": jnp.zeros((1, dim_hidden), jnp.float32),
        "w3": w3, "b3": b3,
    }


def _reference(x, p, matmul_dtype=jnp.float32):
    """Plain-JAX reference of the PyTorch forward (training-mode BN).
    With matmul_dtype=bfloat16 it mirrors the kernel's MXU precision.  b1/b2
    ARE included here — BN cancels them, so this also validates the kernel's
    bias-drop optimization."""
    def dot(a, b):
        return jnp.dot(a.astype(matmul_dtype), b.astype(matmul_dtype),
                       preferred_element_type=jnp.float32)

    def bn_relu(h, g, be):
        mean = h.mean(axis=0, keepdims=True)
        var = ((h - mean) ** 2).mean(axis=0, keepdims=True)
        return jnp.maximum((h - mean) / jnp.sqrt(var + EPS) * g + be, 0.0)

    h = dot(x, p["w1"]) + p["b1"]
    h = bn_relu(h, p["g1"], p["be1"])
    h = dot(h, p["w2"]) + p["b2"]
    h = bn_relu(h, p["g2"], p["be2"])
    return dot(h, p["w3"]) + p["b3"]


if __name__ == "__main__":
    # Small shapes consistent with ProjectionHead(dim_in, dim_out, dim_hidden).
    B, DIM_IN, DIM_HIDDEN, DIM_OUT = 8, 128, 256, 128

    key = jax.random.PRNGKey(0)
    kx, kp = jax.random.split(key)
    x = jax.random.normal(kx, (B, DIM_IN), jnp.float32)
    params = init_params(kp, DIM_IN, DIM_HIDDEN, DIM_OUT)

    ref_bf16 = _reference(x, params, jnp.bfloat16)  # same MXU precision as kernel
    ref_f32 = _reference(x, params, jnp.float32)    # pure-f32 module semantics

    # 1) Primary fused single-kernel path (whole head resident in VMEM).
    out_fused = projection_head(x, params)
    jax.block_until_ready(out_fused)
    assert out_fused.shape == (B, DIM_OUT)
    assert jnp.allclose(out_fused, ref_bf16, atol=1e-2, rtol=1e-2), \
        "fused kernel mismatch vs bf16-matmul reference"
    # Loose check vs the pure-f32 reference (difference is the bf16 MXU path).
    assert jnp.allclose(out_fused, ref_f32, atol=1e-1, rtol=1e-1), \
        "fused kernel drifted too far from f32 reference"

    # 2) Tiled per-layer fallback path, forced with small tiles so the N-grid /
    #    resident-x BlockSpecs are actually exercised at these dims.
    out_tiled = projection_head(x, params, max_tile=128, force_tiled=True)
    jax.block_until_ready(out_tiled)
    assert out_tiled.shape == (B, DIM_OUT)
    assert jnp.allclose(out_tiled, ref_bf16, atol=1e-2, rtol=1e-2), \
        "tiled kernel mismatch vs bf16-matmul reference"

    print("KERNEL_OK")
</pallas_src>

<mosaic_0001>
module attributes {stable_mosaic.version = 11 : i64} {
  func.func @_fused_kernel(%arg0: memref<8x128xf32, #tpu.memory_space<vmem>>, %arg1: memref<128x256xf32, #tpu.memory_space<vmem>>, %arg2: memref<1x256xf32, #tpu.memory_space<vmem>>, %arg3: memref<1x256xf32, #tpu.memory_space<vmem>>, %arg4: memref<256x256xf32, #tpu.memory_space<vmem>>, %arg5: memref<1x256xf32, #tpu.memory_space<vmem>>, %arg6: memref<1x256xf32, #tpu.memory_space<vmem>>, %arg7: memref<256x128xf32, #tpu.memory_space<vmem>>, %arg8: memref<1x128xf32, #tpu.memory_space<vmem>>, %arg9: memref<8x128xf32, #tpu.memory_space<vmem>>) attributes {dimension_semantics = [], scalar_prefetch = 0 : i64, scratch_operands = 0 : i64, tpu.core_type = #tpu.core_type<tc>} {
    %c0 = arith.constant 0 : index
    %c0_0 = arith.constant 0 : index
    %0 = vector.load %arg0[%c0, %c0_0] : memref<8x128xf32, #tpu.memory_space<vmem>>, vector<8x128xf32>
    %1 = arith.truncf %0 : vector<8x128xf32> to vector<8x128xbf16>
    %c0_1 = arith.constant 0 : index
    %c0_2 = arith.constant 0 : index
    %2 = vector.load %arg1[%c0_1, %c0_2] : memref<128x256xf32, #tpu.memory_space<vmem>>, vector<128x256xf32>
    %3 = arith.truncf %2 : vector<128x256xf32> to vector<128x256xbf16>
    %cst = arith.constant dense<0.000000e+00> : vector<8x256xf32>
    %4 = tpu.matmul %1, %3, %cst {dimension_numbers = #tpu.dot_dimension_numbers<[1], [0], [0], [1], [0, 0, 1, 1], [], []>} : vector<8x128xbf16>, vector<128x256xbf16>, vector<8x256xf32> -> vector<8x256xf32>
    %c0_3 = arith.constant 0 : index
    %c0_4 = arith.constant 0 : index
    %5 = vector.load %arg2[%c0_3, %c0_4] : memref<1x256xf32, #tpu.memory_space<vmem>>, vector<1x256xf32>
    %c0_5 = arith.constant 0 : index
    %c0_6 = arith.constant 0 : index
    %6 = vector.load %arg3[%c0_5, %c0_6] : memref<1x256xf32, #tpu.memory_space<vmem>>, vector<1x256xf32>
    %cst_7 = arith.constant dense<0.000000e+00> : vector<256xf32>
    %7 = vector.multi_reduction <add>, %4, %cst_7 [0] : vector<8x256xf32> to vector<256xf32>
    %8 = vector.shape_cast %7 : vector<256xf32> to vector<1x256xf32>
    %cst_8 = arith.constant 8.000000e+00 : f32
    %9 = vector.broadcast %cst_8 : f32 to vector<1x256xf32>
    %10 = arith.divf %8, %9 : vector<1x256xf32>
    %11 = vector.broadcast %10 : vector<1x256xf32> to vector<8x256xf32>
    %12 = arith.subf %4, %11 : vector<8x256xf32>
    %13 = arith.mulf %12, %12 : vector<8x256xf32>
    %cst_9 = arith.constant dense<0.000000e+00> : vector<256xf32>
    %14 = vector.multi_reduction <add>, %13, %cst_9 [0] : vector<8x256xf32> to vector<256xf32>
    %15 = vector.shape_cast %14 : vector<256xf32> to vector<1x256xf32>
    %cst_10 = arith.constant 8.000000e+00 : f32
    %16 = vector.broadcast %cst_10 : f32 to vector<1x256xf32>
    %17 = arith.divf %15, %16 : vector<1x256xf32>
    %cst_11 = arith.constant 9.99999974E-6 : f32
    %18 = vector.broadcast %cst_11 : f32 to vector<1x256xf32>
    %19 = arith.addf %17, %18 : vector<1x256xf32>
    %20 = math.rsqrt %19 : vector<1x256xf32>
    %21 = arith.mulf %5, %20 : vector<1x256xf32>
    %22 = vector.broadcast %21 : vector<1x256xf32> to vector<8x256xf32>
    %23 = arith.mulf %12, %22 : vector<8x256xf32>
    %24 = vector.broadcast %6 : vector<1x256xf32> to vector<8x256xf32>
    %25 = arith.addf %23, %24 : vector<8x256xf32>
    %cst_12 = arith.constant 0.000000e+00 : f32
    %26 = vector.broadcast %cst_12 : f32 to vector<8x256xf32>
    %27 = arith.maximumf %25, %26 : vector<8x256xf32>
    %28 = arith.truncf %27 : vector<8x256xf32> to vector<8x256xbf16>
    %c0_13 = arith.constant 0 : index
    %c0_14 = arith.constant 0 : index
    %29 = vector.load %arg4[%c0_13, %c0_14] : memref<256x256xf32, #tpu.memory_space<vmem>>, vector<256x256xf32>
    %30 = arith.truncf %29 : vector<256x256xf32> to vector<256x256xbf16>
    %cst_15 = arith.constant dense<0.000000e+00> : vector<8x256xf32>
    %31 = tpu.matmul %28, %30, %cst_15 {dimension_numbers = #tpu.dot_dimension_numbers<[1], [0], [0], [1], [0, 0, 1, 1], [], []>} : vector<8x256xbf16>, vector<256x256xbf16>, vector<8x256xf32> -> vector<8x256xf32>
    %c0_16 = arith.constant 0 : index
    %c0_17 = arith.constant 0 : index
    %32 = vector.load %arg5[%c0_16, %c0_17] : memref<1x256xf32, #tpu.memory_space<vmem>>, vector<1x256xf32>
    %c0_18 = arith.constant 0 : index
    %c0_19 = arith.constant 0 : index
    %33 = vector.load %arg6[%c0_18, %c0_19] : memref<1x256xf32, #tpu.memory_space<vmem>>, vector<1x256xf32>
    %cst_20 = arith.constant dense<0.000000e+00> : vector<256xf32>
    %34 = vector.multi_reduction <add>, %31, %cst_20 [0] : vector<8x256xf32> to vector<256xf32>
    %35 = vector.shape_cast %34 : vector<256xf32> to vector<1x256xf32>
    %cst_21 = arith.constant 8.000000e+00 : f32
    %36 = vector.broadcast %cst_21 : f32 to vector<1x256xf32>
    %37 = arith.divf %35, %36 : vector<1x256xf32>
    %38 = vector.broadcast %37 : vector<1x256xf32> to vector<8x256xf32>
    %39 = arith.subf %31, %38 : vector<8x256xf32>
    %40 = arith.mulf %39, %39 : vector<8x256xf32>
    %cst_22 = arith.constant dense<0.000000e+00> : vector<256xf32>
    %41 = vector.multi_reduction <add>, %40, %cst_22 [0] : vector<8x256xf32> to vector<256xf32>
    %42 = vector.shape_cast %41 : vector<256xf32> to vector<1x256xf32>
    %cst_23 = arith.constant 8.000000e+00 : f32
    %43 = vector.broadcast %cst_23 : f32 to vector<1x256xf32>
    %44 = arith.divf %42, %43 : vector<1x256xf32>
    %cst_24 = arith.constant 9.99999974E-6 : f32
    %45 = vector.broadcast %cst_24 : f32 to vector<1x256xf32>
    %46 = arith.addf %44, %45 : vector<1x256xf32>
    %47 = math.rsqrt %46 : vector<1x256xf32>
    %48 = arith.mulf %32, %47 : vector<1x256xf32>
    %49 = vector.broadcast %48 : vector<1x256xf32> to vector<8x256xf32>
    %50 = arith.mulf %39, %49 : vector<8x256xf32>
    %51 = vector.broadcast %33 : vector<1x256xf32> to vector<8x256xf32>
    %52 = arith.addf %50, %51 : vector<8x256xf32>
    %cst_25 = arith.constant 0.000000e+00 : f32
    %53 = vector.broadcast %cst_25 : f32 to vector<8x256xf32>
    %54 = arith.maximumf %52, %53 : vector<8x256xf32>
    %55 = arith.truncf %54 : vector<8x256xf32> to vector<8x256xbf16>
    %c0_26 = arith.constant 0 : index
    %c0_27 = arith.constant 0 : index
    %56 = vector.load %arg7[%c0_26, %c0_27] : memref<256x128xf32, #tpu.memory_space<vmem>>, vector<256x128xf32>
    %57 = arith.truncf %56 : vector<256x128xf32> to vector<256x128xbf16>
    %cst_28 = arith.constant dense<0.000000e+00> : vector<8x128xf32>
    %58 = tpu.matmul %55, %57, %cst_28 {dimension_numbers = #tpu.dot_dimension_numbers<[1], [0], [0], [1], [0, 0, 1, 1], [], []>} : vector<8x256xbf16>, vector<256x128xbf16>, vector<8x128xf32> -> vector<8x128xf32>
    %c0_29 = arith.constant 0 : index
    %c0_30 = arith.constant 0 : index
    %59 = vector.load %arg8[%c0_29, %c0_30] : memref<1x128xf32, #tpu.memory_space<vmem>>, vector<1x128xf32>
    %60 = vector.broadcast %59 : vector<1x128xf32> to vector<8x128xf32>
    %61 = arith.addf %58, %60 : vector<8x128xf32>
    %c0_31 = arith.constant 0 : index
    %c0_32 = arith.constant 0 : index
    %62 = vector.load %arg9[%c0_31, %c0_32] : memref<8x128xf32, #tpu.memory_space<vmem>>, vector<8x128xf32>
    tpu.vector_store %arg9[%c0_31, %c0_32], %61 {strides = array<i32>} : memref<8x128xf32, #tpu.memory_space<vmem>>, vector<8x128xf32>,
    return
  }
}

</mosaic_0001>

<llo_original>
// kernel: projection_head.1
$region0: #{projection_head.1}
  #allocation0 [shape = 'u32[]', space=smem, size = 0x4, offset = 0x4, fixed_abs, tag = 'smem constant byte address 0x4 - core index']
  #allocation1 [shape = 'u32[144,128]{1,0:T(1,128)}', space=vmem, size = 0x12000, scoped, tag = 'internal scratch']
  %s0 = inlined_call_operand.hbm [shape: f32[8,128], index: 0, kind: input, shape index: {}]
  %s1 = inlined_call_operand.hbm [shape: f32[128,256], index: 1, kind: input, shape index: {}]
  %s2 = inlined_call_operand.vmem [shape: f32[1,256], index: 2, kind: input, shape index: {}]
  %s3 = inlined_call_operand.hbm [shape: f32[1,256], index: 3, kind: input, shape index: {}]
  %s4 = inlined_call_operand.hbm [shape: f32[256,256], index: 4, kind: input, shape index: {}]
  %s5 = inlined_call_operand.vmem [shape: f32[1,256], index: 5, kind: input, shape index: {}]
  %s6 = inlined_call_operand.hbm [shape: f32[1,256], index: 6, kind: input, shape index: {}]
  %s7 = inlined_call_operand.hbm [shape: f32[256,128], index: 7, kind: input, shape index: {}]
  %s8 = inlined_call_operand.vmem [shape: f32[1,128], index: 8, kind: input, shape index: {}]
  %s9 = inlined_call_operand.hbm [shape: f32[8,128], index: 9, kind: output, shape index: {}]
  %s10 = sld [smem:[#allocation0]]
  $region70: #{projection_head.1} parent=0
    _
  %s12 = ssub.s32 1, %s10
  %s13 = scalar_select 0, %s12, %s10
  $region1: #{projection_head.1} parent=0
    #allocation2 [shape = 'u8[4096]{0}', space=vmem, size = 0x1000, scoped, tag = 'input window, operand 0, single buffered']
    #allocation3 [shape = 's32[1]{0}', space=sflag, size = 0x4, scoped, tag = 'scoped memory for projection_head.1']
    #allocation4 [shape = 's32[1]{0}', space=sflag, size = 0x4, scoped, tag = 'scoped memory for projection_head.1']
    #allocation5 [shape = 'u8[131072]{0}', space=vmem, size = 0x20000, scoped, tag = 'input window, operand 1, single buffered']
    #allocation6 [shape = 's32[1]{0}', space=sflag, size = 0x4, scoped, tag = 'scoped memory for projection_head.1']
    #allocation7 [shape = 'u8[1024]{0}', space=vmem, size = 0x400, scoped, tag = 'input window, operand 3, single buffered']
    #allocation8 [shape = 'u8[262144]{0}', space=vmem, size = 0x40000, scoped, tag = 'input window, operand 4, single buffered']
    #allocation9 [shape = 's32[1]{0}', space=sflag, size = 0x4, scoped, tag = 'scoped memory for projection_head.1']
    #allocation10 [shape = 'u8[1024]{0}', space=vmem, size = 0x400, scoped, tag = 'input window, operand 6, single buffered']
    #allocation11 [shape = 'u8[131072]{0}', space=vmem, size = 0x20000, scoped, tag = 'input window, operand 7, single buffered']
    #allocation12 [shape = 's32[1]{0}', space=sflag, size = 0x4, scoped, tag = 'scoped memory for projection_head.1']
    #allocation13 [shape = 'u8[4096]{0}', space=vmem, size = 0x1000, scoped, tag = 'output window, operand 0, single buffered']
    %14 = vsyncpa [#allocation3], 0
    %15 = vsyncpa [#allocation6], 0
    %16 = vsyncpa [#allocation9], 0
    %17 = vsyncpa [#allocation12], 0
    %18 = vsyncpa [#allocation4], 0
    // Predicated region
    $region2: #{projection_head.1} parent=1 // pred_check
      _
    $region3: #{projection_head.1} parent=1 // pred_check_branch
      %20 = sbr.rel (0) target = $region5
    $region4: #{projection_head.1} parent=1 // pred_region
      %s22 = ssub.s32 128, 128
      %23 = vsyncadd [#allocation3], %s22
      %s25 = sshll.u32 [#allocation2], 4
      %s26 = int_to_ptr.vmem [resolvable:$true] %s25
      %28 = dma.hbm_to_vmem [thread:$0]  %s0, 128, %s26, [#allocation3]
    $region5: #{projection_head.1} parent=1 // pred_fallthru
      _
    // Predicated region
    $region6: #{projection_head.1} parent=1 // pred_check
      _
    $region7: #{projection_head.1} parent=1 // pred_check_branch
      %30 = sbr.rel (0) target = $region9
    $region8: #{projection_head.1} parent=1 // pred_region
      %s32 = ssub.s32 4096, 4096
      %33 = vsyncadd [#allocation6], %s32
      %s34 = sshll.u32 [#allocation5], 4
      %s35 = int_to_ptr.vmem [resolvable:$true] %s34
      %40 = dma.hbm_to_vmem [thread:$0]  %s1, 4096, %s35, [#allocation6], 256, 256, 16
    $region9: #{projection_head.1} parent=1 // pred_fallthru
      _
    // Predicated region
    $region10: #{projection_head.1} parent=1 // pred_check
      _
    $region11: #{projection_head.1} parent=1 // pred_check_branch
      %42 = sbr.rel (0) target = $region13
    $region12: #{projection_head.1} parent=1 // pred_region
      _
    $region13: #{projection_head.1} parent=1 // pred_fallthru
      _
    // Predicated region
    $region14: #{projection_head.1} parent=1 // pred_check
      _
    $region15: #{projection_head.1} parent=1 // pred_check_branch
      %44 = sbr.rel (0) target = $region17
    $region16: #{projection_head.1} parent=1 // pred_region
      %s46 = ssub.s32 32, 32
      %47 = vsyncadd [#allocation6], %s46
      %s49 = sshll.u32 [#allocation7], 4
      %s50 = int_to_ptr.vmem [resolvable:$true] %s49
      %52 = dma.hbm_to_vmem [thread:$0]  %s3, 32, %s50, [#allocation6]
    $region17: #{projection_head.1} parent=1 // pred_fallthru
      _
    // Predicated region
    $region18: #{projection_head.1} parent=1 // pred_check
      _
    $region19: #{projection_head.1} parent=1 // pred_check_branch
      %54 = sbr.rel (0) target = $region21
    $region20: #{projection_head.1} parent=1 // pred_region
      %s56 = ssub.s32 8192, 8192
      %57 = vsyncadd [#allocation9], %s56
      %s58 = sshll.u32 [#allocation8], 4
      %s59 = int_to_ptr.vmem [resolvable:$true] %s58
      %64 = dma.hbm_to_vmem [thread:$0]  %s4, 8192, %s59, [#allocation9], 256, 256, 16
    $region21: #{projection_head.1} parent=1 // pred_fallthru
      _
    // Predicated region
    $region22: #{projection_head.1} parent=1 // pred_check
      _
    $region23: #{projection_head.1} parent=1 // pred_check_branch
      %66 = sbr.rel (0) target = $region25
    $region24: #{projection_head.1} parent=1 // pred_region
      _
    $region25: #{projection_head.1} parent=1 // pred_fallthru
      _
    // Predicated region
    $region26: #{projection_head.1} parent=1 // pred_check
      _
    $region27: #{projection_head.1} parent=1 // pred_check_branch
      %68 = sbr.rel (0) target = $region29
    $region28: #{projection_head.1} parent=1 // pred_region
      %s70 = ssub.s32 32, 32
      %71 = vsyncadd [#allocation9], %s70
      %s73 = sshll.u32 [#allocation10], 4
      %s74 = int_to_ptr.vmem [resolvable:$true] %s73
      %76 = dma.hbm_to_vmem [thread:$0]  %s6, 32, %s74, [#allocation9]
    $region29: #{projection_head.1} parent=1 // pred_fallthru
      _
    // Predicated region
    $region30: #{projection_head.1} parent=1 // pred_check
      _
    $region31: #{projection_head.1} parent=1 // pred_check_branch
      %78 = sbr.rel (0) target = $region33
    $region32: #{projection_head.1} parent=1 // pred_region
      %s80 = ssub.s32 4096, 4096
      %81 = vsyncadd [#allocation12], %s80
      %s82 = sshll.u32 [#allocation11], 4
      %s83 = int_to_ptr.vmem [resolvable:$true] %s82
      %88 = dma.hbm_to_vmem [thread:$0]  %s7, 4096, %s83, [#allocation12], 128, 128, 8
    $region33: #{projection_head.1} parent=1 // pred_fallthru
      _
    // Predicated region
    $region34: #{projection_head.1} parent=1 // pred_check
      _
    $region35: #{projection_head.1} parent=1 // pred_check_branch
      %90 = sbr.rel (0) target = $region37
    $region36: #{projection_head.1} parent=1 // pred_region
      _
    $region37: #{projection_head.1} parent=1 // pred_fallthru
      _
    // Predicated region
    $region38: #{projection_head.1} parent=1 // pred_check
      _
    $region39: #{projection_head.1} parent=1 // pred_check_branch
      %92 = sbr.rel (0) target = $region41
    $region40: #{projection_head.1} parent=1 // pred_region
      %93 = dma.done [#allocation3], 128
    $region41: #{projection_head.1} parent=1 // pred_fallthru
      _
    // Predicated region
    $region42: #{projection_head.1} parent=1 // pred_check
      _
    $region43: #{projection_head.1} parent=1 // pred_check_branch
      %95 = sbr.rel (0) target = $region45
    $region44: #{projection_head.1} parent=1 // pred_region
      %96 = dma.done [#allocation6], 4096
    $region45: #{projection_head.1} parent=1 // pred_fallthru
      _
    // Predicated region
    $region46: #{projection_head.1} parent=1 // pred_check
      _
    $region47: #{projection_head.1} parent=1 // pred_check_branch
      %98 = sbr.rel (0) target = $region49
    $region48: #{projection_head.1} parent=1 // pred_region
      %99 = dma.done [#allocation6], 32
    $region49: #{projection_head.1} parent=1 // pred_fallthru
      _
    // Predicated region
    $region50: #{projection_head.1} parent=1 // pred_check
      _
    $region51: #{projection_head.1} parent=1 // pred_check_branch
      %101 = sbr.rel (0) target = $region53
    $region52: #{projection_head.1} parent=1 // pred_region
      %102 = dma.done [#allocation9], 8192
    $region53: #{projection_head.1} parent=1 // pred_fallthru
      _
    // Predicated region
    $region54: #{projection_head.1} parent=1 // pred_check
      _
    $region55: #{projection_head.1} parent=1 // pred_check_branch
      %104 = sbr.rel (0) target = $region57
    $region56: #{projection_head.1} parent=1 // pred_region
      %105 = dma.done [#allocation9], 32
    $region57: #{projection_head.1} parent=1 // pred_fallthru
      _
    // Predicated region
    $region58: #{projection_head.1} parent=1 // pred_check
      _
    $region59: #{projection_head.1} parent=1 // pred_check_branch
      %107 = sbr.rel (0) target = $region61
    $region60: #{projection_head.1} parent=1 // pred_region
      %108 = dma.done [#allocation12], 4096
    $region61: #{projection_head.1} parent=1 // pred_fallthru
      _
    %v110 = vld [vmem:[#allocation2] sm:$0xff]
    %v111 = vpack.c.bf16 %v110, %v110
    %v112 = vld [vmem:[#allocation5] sm:$0xff]
    %v113 = vld [vmem:[#allocation5 + $0x8] sm:$0xff]
    %v114 = vld [vmem:[#allocation5 + $0x10] sm:$0xff]
    %v115 = vld [vmem:[#allocation5 + $0x18] sm:$0xff]
    %v116 = vld [vmem:[#allocation5 + $0x20] sm:$0xff]
    %v117 = vld [vmem:[#allocation5 + $0x28] sm:$0xff]
    %v118 = vld [vmem:[#allocation5 + $0x30] sm:$0xff]
    %v119 = vld [vmem:[#allocation5 + $0x38] sm:$0xff]
    %v120 = vld [vmem:[#allocation5 + $0x40] sm:$0xff]
    %v121 = vld [vmem:[#allocation5 + $0x48] sm:$0xff]
    %v122 = vld [vmem:[#allocation5 + $0x50] sm:$0xff]
    %v123 = vld [vmem:[#allocation5 + $0x58] sm:$0xff]
    %v124 = vld [vmem:[#allocation5 + $0x60] sm:$0xff]
    %v125 = vld [vmem:[#allocation5 + $0x68] sm:$0xff]
    %v126 = vld [vmem:[#allocation5 + $0x70] sm:$0xff]
    %v127 = vld [vmem:[#allocation5 + $0x78] sm:$0xff]
    %v128 = vld [vmem:[#allocation5 + $0x80] sm:$0xff]
    %v129 = vld [vmem:[#allocation5 + $0x88] sm:$0xff]
    %v130 = vld [vmem:[#allocation5 + $0x90] sm:$0xff]
    %v131 = vld [vmem:[#allocation5 + $0x98] sm:$0xff]
    %v132 = vld [vmem:[#allocation5 + $0xa0] sm:$0xff]
    %v133 = vld [vmem:[#allocation5 + $0xa8] sm:$0xff]
    %v134 = vld [vmem:[#allocation5 + $0xb0] sm:$0xff]
    %v135 = vld [vmem:[#allocation5 + $0xb8] sm:$0xff]
    %v136 = vld [vmem:[#allocation5 + $0xc0] sm:$0xff]
    %v137 = vld [vmem:[#allocation5 + $0xc8] sm:$0xff]
    %v138 = vld [vmem:[#allocation5 + $0xd0] sm:$0xff]
    %v139 = vld [vmem:[#allocation5 + $0xd8] sm:$0xff]
    %v140 = vld [vmem:[#allocation5 + $0xe0] sm:$0xff]
    %v141 = vld [vmem:[#allocation5 + $0xe8] sm:$0xff]
    %v142 = vld [vmem:[#allocation5 + $0xf0] sm:$0xff]
    %v143 = vld [vmem:[#allocation5 + $0xf8] sm:$0xff]
    %v144 = vpack.c.bf16 %v114, %v112
    %v145 = vpack.c.bf16 %v115, %v113
    %v146 = vpack.c.bf16 %v118, %v116
    %v147 = vpack.c.bf16 %v119, %v117
    %v148 = vpack.c.bf16 %v122, %v120
    %v149 = vpack.c.bf16 %v123, %v121
    %v150 = vpack.c.bf16 %v126, %v124
    %v151 = vpack.c.bf16 %v127, %v125
    %v152 = vpack.c.bf16 %v130, %v128
    %v153 = vpack.c.bf16 %v131, %v129
    %v154 = vpack.c.bf16 %v134, %v132
    %v155 = vpack.c.bf16 %v135, %v133
    %v156 = vpack.c.bf16 %v138, %v136
    %v157 = vpack.c.bf16 %v139, %v137
    %v158 = vpack.c.bf16 %v142, %v140
    %v159 = vpack.c.bf16 %v143, %v141
    %160 = vmatprep.subr.bf16.mxu0 %v159
    %161 = vmatpush1.bf16.msra.mxu0 %v158
    %162 = vmatprep.subr.bf16.mxu0 %v157
    %163 = vmatpush1.bf16.msra.mxu0 %v156
    %164 = vmatprep.subr.bf16.mxu0 %v155
    %165 = vmatpush1.bf16.msra.mxu0 %v154
    %166 = vmatprep.subr.bf16.mxu0 %v153
    %167 = vmatpush1.bf16.msra.mxu0 %v152
    %168 = vmatprep.subr.bf16.mxu0 %v151
    %169 = vmatpush1.bf16.msra.mxu0 %v150
    %170 = vmatprep.subr.bf16.mxu0 %v149
    %171 = vmatpush1.bf16.msra.mxu0 %v148
    %172 = vmatprep.subr.bf16.mxu0 %v147
    %173 = vmatpush1.bf16.msra.mxu0 %v146
    %174 = vmatprep.subr.bf16.mxu0 %v145
    %175 = vmatpush1.bf16.msra.mxu0 %v144
    %176 = vmatprep.subr.bf16.mxu0 0
    %177 = vmatpush2.bf16.msra.mxu0 0
    %178 = vmatprep.subr.bf16.mxu0 0
    %179 = vmatpush2.bf16.msra.mxu0 0
    %180 = vmatprep.subr.bf16.mxu0 0
    %181 = vmatpush2.bf16.msra.mxu0 0
    %182 = vmatprep.subr.bf16.mxu0 0
    %183 = vmatpush2.bf16.msra.mxu0 0
    %184 = vmatprep.subr.bf16.mxu0 0
    %185 = vmatpush2.bf16.msra.mxu0 0
    %186 = vmatprep.subr.bf16.mxu0 0
    %187 = vmatpush2.bf16.msra.mxu0 0
    %188 = vmatprep.subr.bf16.mxu0 0
    %189 = vmatpush2.bf16.msra.mxu0 0
    %190 = vmatprep.subr.bf16.mxu0 0
    %191 = vmatpush2.bf16.msra.mxu0 0
    %192 = vmatprep.mubr.bf16.mxu0 0
    %193 = vmatmul.mubr.bf16.gmra.mxu0 %v111
    %v194 = vpop.f32.mrf.mxu0
    %v195 = vadd.f32 0.0, %v194
    %v196 = vpop.f32.mrf.mxu0
    %v197 = vadd.f32 0.0, %v196
    %v198 = vpop.f32.mrf.mxu0
    %v199 = vpop.f32.mrf.mxu0
    %200 = vdwg.mxu0
    %v201 = vld [vmem:[%s2] sm:$0x3]
    %v202 = vld [vmem:[#allocation7] sm:$0x3]
    %v203 = vrot.slane %v195, 4
    %v204 = vadd.f32 %v195, %v203
    %v205 = vrot.slane %v204, 2
    %v206 = vadd.f32 %v204, %v205
    %v207 = vrot.slane %v206, 1
    %v208 = vadd.f32 %v206, %v207
    %v209 = vrot.slane %v197, 4
    %v210 = vadd.f32 %v197, %v209
    %v211 = vrot.slane %v210, 2
    %v212 = vadd.f32 %v210, %v211
    %v213 = vrot.slane %v212, 1
    %v214 = vadd.f32 %v212, %v213
    %v215 = vrcp.pop 8.0
    %v216 = vmul.f32 %v208, %v215
    %v217 = vmul.f32 %v214, %v215
    %v218 = vsub.f32 %v195, %v216
    %v219 = vsub.f32 %v197, %v217
    %v220 = vmul.f32 %v218, %v218
    %v221 = vmul.f32 %v219, %v219
    %v222 = vrot.slane %v220, 4
    %v223 = vadd.f32 %v220, %v222
    %v224 = vrot.slane %v223, 2
    %v225 = vadd.f32 %v223, %v224
    %v226 = vrot.slane %v225, 1
    %v227 = vadd.f32 %v225, %v226
    %v228 = vrot.slane %v221, 4
    %v229 = vadd.f32 %v221, %v228
    %v230 = vrot.slane %v229, 2
    %v231 = vadd.f32 %v229, %v230
    %v232 = vrot.slane %v231, 1
    %v233 = vadd.f32 %v231, %v232
    %v234 = vmul.f32 %v227, %v215
    %v235 = vmul.f32 %v233, %v215
    %v236 = vadd.f32 %v234, 1e-05
    %v237 = vadd.f32 %v235, 1e-05
    %v238 = vrsqrt.pop %v236
    %v239 = vrsqrt.pop %v237
    %v242 = vcombine.low %v238, %v239
    %v244 = vunpack.c.l.s4 1966171168
    %v245 = vunpack.c.0.s8 %v244
    %v246 = vlaneseq
    %v247 = vshrl.u32 %v246, 7
    %v248 = vsub.s32 %v245, %v247
    %v249 = vrot.slane %v242, %v248
    %v251 = vunpack.c.l.s4 1966171168
    %v252 = vunpack.c.0.s8 %v251
    %v253 = vlaneseq
    %v254 = vshrl.u32 %v253, 7
    %v255 = vsub.s32 %v252, %v254
    %v256 = vrot.slane %v249, %v255
    %v258 = vmul.f32 %v201, %v256
    %v260 = vlaneseq
    %v261 = vshrl.u32 %v260, 7
    %v262 = vsub.s32 0, %v261
    %v263 = vrot.slane %v258, %v262
    %v264 = vlaneseq
    %v265 = vshrl.u32 %v264, 7
    %v266 = vsub.s32 1, %v265
    %v267 = vrot.slane %v258, %v266
    %v270 = vmul.f32 %v218, %v263
    %v271 = vmul.f32 %v219, %v267
    %v273 = vlaneseq
    %v274 = vshrl.u32 %v273, 7
    %v275 = vsub.s32 0, %v274
    %v276 = vrot.slane %v202, %v275
    %v277 = vlaneseq
    %v278 = vshrl.u32 %v277, 7
    %v279 = vsub.s32 1, %v278
    %v280 = vrot.slane %v202, %v279
    %v283 = vadd.f32 %v270, %v276
    %v284 = vadd.f32 %v271, %v280
    %v285 = vmax.f32 %v283, 0.0
    %v286 = vmax.f32 %v284, 0.0
    %v287 = vpack.c.bf16 %v285, %v285
    %v288 = vpack.c.bf16 %v286, %v286
    %v289 = vld [vmem:[#allocation8] sm:$0xff]
    %v290 = vld [vmem:[#allocation8 + $0x8] sm:$0xff]
    %v291 = vld [vmem:[#allocation8 + $0x10] sm:$0xff]
    %v292 = vld [vmem:[#allocation8 + $0x18] sm:$0xff]
    %v293 = vld [vmem:[#allocation8 + $0x20] sm:$0xff]
    %v294 = vld [vmem:[#allocation8 + $0x28] sm:$0xff]
    %v295 = vld [vmem:[#allocation8 + $0x30] sm:$0xff]
    %v296 = vld [vmem:[#allocation8 + $0x38] sm:$0xff]
    %v297 = vld [vmem:[#allocation8 + $0x40] sm:$0xff]
    %v298 = vld [vmem:[#allocation8 + $0x48] sm:$0xff]
    %v299 = vld [vmem:[#allocation8 + $0x50] sm:$0xff]
    %v300 = vld [vmem:[#allocation8 + $0x58] sm:$0xff]
    %v301 = vld [vmem:[#allocation8 + $0x60] sm:$0xff]
    %v302 = vld [vmem:[#allocation8 + $0x68] sm:$0xff]
    %v303 = vld [vmem:[#allocation8 + $0x70] sm:$0xff]
    %v304 = vld [vmem:[#allocation8 + $0x78] sm:$0xff]
    %v305 = vld [vmem:[#allocation8 + $0x80] sm:$0xff]
    %v306 = vld [vmem:[#allocation8 + $0x88] sm:$0xff]
    %v307 = vld [vmem:[#allocation8 + $0x90] sm:$0xff]
    %v308 = vld [vmem:[#allocation8 + $0x98] sm:$0xff]
    %v309 = vld [vmem:[#allocation8 + $0xa0] sm:$0xff]
    %v310 = vld [vmem:[#allocation8 + $0xa8] sm:$0xff]
    %v311 = vld [vmem:[#allocation8 + $0xb0] sm:$0xff]
    %v312 = vld [vmem:[#allocation8 + $0xb8] sm:$0xff]
    %v313 = vld [vmem:[#allocation8 + $0xc0] sm:$0xff]
    %v314 = vld [vmem:[#allocation8 + $0xc8] sm:$0xff]
    %v315 = vld [vmem:[#allocation8 + $0xd0] sm:$0xff]
    %v316 = vld [vmem:[#allocation8 + $0xd8] sm:$0xff]
    %v317 = vld [vmem:[#allocation8 + $0xe0] sm:$0xff]
    %v318 = vld [vmem:[#allocation8 + $0xe8] sm:$0xff]
    %v319 = vld [vmem:[#allocation8 + $0xf0] sm:$0xff]
    %v320 = vld [vmem:[#allocation8 + $0xf8] sm:$0xff]
    %v321 = vld [vmem:[#allocation8 + $0x100] sm:$0xff]
    %v322 = vld [vmem:[#allocation8 + $0x108] sm:$0xff]
    %v323 = vld [vmem:[#allocation8 + $0x110] sm:$0xff]
    %v324 = vld [vmem:[#allocation8 + $0x118] sm:$0xff]
    %v325 = vld [vmem:[#allocation8 + $0x120] sm:$0xff]
    %v326 = vld [vmem:[#allocation8 + $0x128] sm:$0xff]
    %v327 = vld [vmem:[#allocation8 + $0x130] sm:$0xff]
    %v328 = vld [vmem:[#allocation8 + $0x138] sm:$0xff]
    %v329 = vld [vmem:[#allocation8 + $0x140] sm:$0xff]
    %v330 = vld [vmem:[#allocation8 + $0x148] sm:$0xff]
    %v331 = vld [vmem:[#allocation8 + $0x150] sm:$0xff]
    %v332 = vld [vmem:[#allocation8 + $0x158] sm:$0xff]
    %v333 = vld [vmem:[#allocation8 + $0x160] sm:$0xff]
    %v334 = vld [vmem:[#allocation8 + $0x168] sm:$0xff]
    %v335 = vld [vmem:[#allocation8 + $0x170] sm:$0xff]
    %v336 = vld [vmem:[#allocation8 + $0x178] sm:$0xff]
    %v337 = vld [vmem:[#allocation8 + $0x180] sm:$0xff]
    %v338 = vld [vmem:[#allocation8 + $0x188] sm:$0xff]
    %v339 = vld [vmem:[#allocation8 + $0x190] sm:$0xff]
    %v340 = vld [vmem:[#allocation8 + $0x198] sm:$0xff]
    %v341 = vld [vmem:[#allocation8 + $0x1a0] sm:$0xff]
    %v342 = vld [vmem:[#allocation8 + $0x1a8] sm:$0xff]
    %v343 = vld [vmem:[#allocation8 + $0x1b0] sm:$0xff]
    %v344 = vld [vmem:[#allocation8 + $0x1b8] sm:$0xff]
    %v345 = vld [vmem:[#allocation8 + $0x1c0] sm:$0xff]
    %v346 = vld [vmem:[#allocation8 + $0x1c8] sm:$0xff]
    %v347 = vld [vmem:[#allocation8 + $0x1d0] sm:$0xff]
    %v348 = vld [vmem:[#allocation8 + $0x1d8] sm:$0xff]
    %v349 = vld [vmem:[#allocation8 + $0x1e0] sm:$0xff]
    %v350 = vld [vmem:[#allocation8 + $0x1e8] sm:$0xff]
    %v351 = vld [vmem:[#allocation8 + $0x1f0] sm:$0xff]
    %v352 = vld [vmem:[#allocation8 + $0x1f8] sm:$0xff]
    %v353 = vpack.c.bf16 %v291, %v289
    %v354 = vpack.c.bf16 %v292, %v290
    %v355 = vpack.c.bf16 %v295, %v293
    %v356 = vpack.c.bf16 %v296, %v294
    %v357 = vpack.c.bf16 %v299, %v297
    %v358 = vpack.c.bf16 %v300, %v298
    %v359 = vpack.c.bf16 %v303, %v301
    %v360 = vpack.c.bf16 %v304, %v302
    %v361 = vpack.c.bf16 %v307, %v305
    %v362 = vpack.c.bf16 %v308, %v306
    %v363 = vpack.c.bf16 %v311, %v309
    %v364 = vpack.c.bf16 %v312, %v310
    %v365 = vpack.c.bf16 %v315, %v313
    %v366 = vpack.c.bf16 %v316, %v314
    %v367 = vpack.c.bf16 %v319, %v317
    %v368 = vpack.c.bf16 %v320, %v318
    %v369 = vpack.c.bf16 %v323, %v321
    %v370 = vpack.c.bf16 %v324, %v322
    %v371 = vpack.c.bf16 %v327, %v325
    %v372 = vpack.c.bf16 %v328, %v326
    %v373 = vpack.c.bf16 %v331, %v329
    %v374 = vpack.c.bf16 %v332, %v330
    %v375 = vpack.c.bf16 %v335, %v333
    %v376 = vpack.c.bf16 %v336, %v334
    %v377 = vpack.c.bf16 %v339, %v337
    %v378 = vpack.c.bf16 %v340, %v338
    %v379 = vpack.c.bf16 %v343, %v341
    %v380 = vpack.c.bf16 %v344, %v342
    %v381 = vpack.c.bf16 %v347, %v345
    %v382 = vpack.c.bf16 %v348, %v346
    %v383 = vpack.c.bf16 %v351, %v349
    %v384 = vpack.c.bf16 %v352, %v350
    %385 = vmatprep.subr.bf16.mxu0 %v368
    %386 = vmatpush1.bf16.msra.mxu0 %v367
    %387 = vmatprep.subr.bf16.mxu0 %v366
    %388 = vmatpush1.bf16.msra.mxu0 %v365
    %389 = vmatprep.subr.bf16.mxu0 %v364
    %390 = vmatpush1.bf16.msra.mxu0 %v363
    %391 = vmatprep.subr.bf16.mxu0 %v362
    %392 = vmatpush1.bf16.msra.mxu0 %v361
    %393 = vmatprep.subr.bf16.mxu0 %v360
    %394 = vmatpush1.bf16.msra.mxu0 %v359
    %395 = vmatprep.subr.bf16.mxu0 %v358
    %396 = vmatpush1.bf16.msra.mxu0 %v357
    %397 = vmatprep.subr.bf16.mxu0 %v356
    %398 = vmatpush1.bf16.msra.mxu0 %v355
    %399 = vmatprep.subr.bf16.mxu0 %v354
    %400 = vmatpush1.bf16.msra.mxu0 %v353
    %401 = vmatprep.subr.bf16.mxu0 %v384
    %402 = vmatpush2.bf16.msra.mxu0 %v383
    %403 = vmatprep.subr.bf16.mxu0 %v382
    %404 = vmatpush2.bf16.msra.mxu0 %v381
    %405 = vmatprep.subr.bf16.mxu0 %v380
    %406 = vmatpush2.bf16.msra.mxu0 %v379
    %407 = vmatprep.subr.bf16.mxu0 %v378
    %408 = vmatpush2.bf16.msra.mxu0 %v377
    %409 = vmatprep.subr.bf16.mxu0 %v376
    %410 = vmatpush2.bf16.msra.mxu0 %v375
    %411 = vmatprep.subr.bf16.mxu0 %v374
    %412 = vmatpush2.bf16.msra.mxu0 %v373
    %413 = vmatprep.subr.bf16.mxu0 %v372
    %414 = vmatpush2.bf16.msra.mxu0 %v371
    %415 = vmatprep.subr.bf16.mxu0 %v370
    %416 = vmatpush2.bf16.msra.mxu0 %v369
    %417 = vmatprep.mubr.bf16.mxu0 %v288
    %418 = vmatmul.mubr.bf16.gmra.mxu0 %v287
    %v419 = vpop.f32.mrf.mxu0
    %v420 = vadd.f32 0.0, %v419
    %v421 = vpop.f32.mrf.mxu0
    %v422 = vadd.f32 0.0, %v421
    %v423 = vpop.f32.mrf.mxu0
    %v424 = vpop.f32.mrf.mxu0
    %425 = vdwg.mxu0
    %v426 = vld [vmem:[%s5] sm:$0x3]
    %v427 = vld [vmem:[#allocation10] sm:$0x3]
    %v428 = vrot.slane %v420, 4
    %v429 = vadd.f32 %v420, %v428
    %v430 = vrot.slane %v429, 2
    %v431 = vadd.f32 %v429, %v430
    %v432 = vrot.slane %v431, 1
    %v433 = vadd.f32 %v431, %v432
    %v434 = vrot.slane %v422, 4
    %v435 = vadd.f32 %v422, %v434
    %v436 = vrot.slane %v435, 2
    %v437 = vadd.f32 %v435, %v436
    %v438 = vrot.slane %v437, 1
    %v439 = vadd.f32 %v437, %v438
    %v440 = vmul.f32 %v433, %v215
    %v441 = vmul.f32 %v439, %v215
    %v442 = vsub.f32 %v420, %v440
    %v443 = vsub.f32 %v422, %v441
    %v444 = vmul.f32 %v442, %v442
    %v445 = vmul.f32 %v443, %v443
    %v446 = vrot.slane %v444, 4
    %v447 = vadd.f32 %v444, %v446
    %v448 = vrot.slane %v447, 2
    %v449 = vadd.f32 %v447, %v448
    %v450 = vrot.slane %v449, 1
    %v451 = vadd.f32 %v449, %v450
    %v452 = vrot.slane %v445, 4
    %v453 = vadd.f32 %v445, %v452
    %v454 = vrot.slane %v453, 2
    %v455 = vadd.f32 %v453, %v454
    %v456 = vrot.slane %v455, 1
    %v457 = vadd.f32 %v455, %v456
    %v458 = vmul.f32 %v451, %v215
    %v459 = vmul.f32 %v457, %v215
    %v460 = vadd.f32 %v458, 1e-05
    %v461 = vadd.f32 %v459, 1e-05
    %v462 = vrsqrt.pop %v460
    %v463 = vrsqrt.pop %v461
    %v466 = vcombine.low %v462, %v463
    %v468 = vunpack.c.l.s4 1966171168
    %v469 = vunpack.c.0.s8 %v468
    %v470 = vlaneseq
    %v471 = vshrl.u32 %v470, 7
    %v472 = vsub.s32 %v469, %v471
    %v473 = vrot.slane %v466, %v472
    %v475 = vunpack.c.l.s4 1966171168
    %v476 = vunpack.c.0.s8 %v475
    %v477 = vlaneseq
    %v478 = vshrl.u32 %v477, 7
    %v479 = vsub.s32 %v476, %v478
    %v480 = vrot.slane %v473, %v479
    %v482 = vmul.f32 %v426, %v480
    %v484 = vlaneseq
    %v485 = vshrl.u32 %v484, 7
    %v486 = vsub.s32 0, %v485
    %v487 = vrot.slane %v482, %v486
    %v488 = vlaneseq
    %v489 = vshrl.u32 %v488, 7
    %v490 = vsub.s32 1, %v489
    %v491 = vrot.slane %v482, %v490
    %v494 = vmul.f32 %v442, %v487
    %v495 = vmul.f32 %v443, %v491
    %v497 = vlaneseq
    %v498 = vshrl.u32 %v497, 7
    %v499 = vsub.s32 0, %v498
    %v500 = vrot.slane %v427, %v499
    %v501 = vlaneseq
    %v502 = vshrl.u32 %v501, 7
    %v503 = vsub.s32 1, %v502
    %v504 = vrot.slane %v427, %v503
    %v507 = vadd.f32 %v494, %v500
    %v508 = vadd.f32 %v495, %v504
    %v509 = vmax.f32 %v507, 0.0
    %v510 = vmax.f32 %v508, 0.0
    %v511 = vpack.c.bf16 %v509, %v509
    %v512 = vpack.c.bf16 %v510, %v510
    %v513 = vld [vmem:[#allocation11] sm:$0xff]
    %v514 = vld [vmem:[#allocation11 + $0x8] sm:$0xff]
    %v515 = vld [vmem:[#allocation11 + $0x10] sm:$0xff]
    %v516 = vld [vmem:[#allocation11 + $0x18] sm:$0xff]
    %v517 = vld [vmem:[#allocation11 + $0x20] sm:$0xff]
    %v518 = vld [vmem:[#allocation11 + $0x28] sm:$0xff]
    %v519 = vld [vmem:[#allocation11 + $0x30] sm:$0xff]
    %v520 = vld [vmem:[#allocation11 + $0x38] sm:$0xff]
    %v521 = vld [vmem:[#allocation11 + $0x40] sm:$0xff]
    %v522 = vld [vmem:[#allocation11 + $0x48] sm:$0xff]
    %v523 = vld [vmem:[#allocation11 + $0x50] sm:$0xff]
    %v524 = vld [vmem:[#allocation11 + $0x58] sm:$0xff]
    %v525 = vld [vmem:[#allocation11 + $0x60] sm:$0xff]
    %v526 = vld [vmem:[#allocation11 + $0x68] sm:$0xff]
    %v527 = vld [vmem:[#allocation11 + $0x70] sm:$0xff]
    %v528 = vld [vmem:[#allocation11 + $0x78] sm:$0xff]
    %v529 = vld [vmem:[#allocation11 + $0x80] sm:$0xff]
    %v530 = vld [vmem:[#allocation11 + $0x88] sm:$0xff]
    %v531 = vld [vmem:[#allocation11 + $0x90] sm:$0xff]
    %v532 = vld [vmem:[#allocation11 + $0x98] sm:$0xff]
    %v533 = vld [vmem:[#allocation11 + $0xa0] sm:$0xff]
    %v534 = vld [vmem:[#allocation11 + $0xa8] sm:$0xff]
    %v535 = vld [vmem:[#allocation11 + $0xb0] sm:$0xff]
    %v536 = vld [vmem:[#allocation11 + $0xb8] sm:$0xff]
    %v537 = vld [vmem:[#allocation11 + $0xc0] sm:$0xff]
    %v538 = vld [vmem:[#allocation11 + $0xc8] sm:$0xff]
    %v539 = vld [vmem:[#allocation11 + $0xd0] sm:$0xff]
    %v540 = vld [vmem:[#allocation11 + $0xd8] sm:$0xff]
    %v541 = vld [vmem:[#allocation11 + $0xe0] sm:$0xff]
    %v542 = vld [vmem:[#allocation11 + $0xe8] sm:$0xff]
    %v543 = vld [vmem:[#allocation11 + $0xf0] sm:$0xff]
    %v544 = vld [vmem:[#allocation11 + $0xf8] sm:$0xff]
    %v545 = vpack.c.bf16 %v514, %v513
    %v546 = vpack.c.bf16 %v516, %v515
    %v547 = vpack.c.bf16 %v518, %v517
    %v548 = vpack.c.bf16 %v520, %v519
    %v549 = vpack.c.bf16 %v522, %v521
    %v550 = vpack.c.bf16 %v524, %v523
    %v551 = vpack.c.bf16 %v526, %v525
    %v552 = vpack.c.bf16 %v528, %v527
    %v553 = vpack.c.bf16 %v530, %v529
    %v554 = vpack.c.bf16 %v532, %v531
    %v555 = vpack.c.bf16 %v534, %v533
    %v556 = vpack.c.bf16 %v536, %v535
    %v557 = vpack.c.bf16 %v538, %v537
    %v558 = vpack.c.bf16 %v540, %v539
    %v559 = vpack.c.bf16 %v542, %v541
    %v560 = vpack.c.bf16 %v544, %v543
    %v561 = vld [vmem:[%s8] sm:$0x1]
    %v563 = vlaneseq
    %v564 = vshrl.u32 %v563, 7
    %v565 = vsub.s32 0, %v564
    %v566 = vrot.slane %v561, %v565
    %568 = vmatprep.subr.bf16.mxu0 0
    %569 = vmatpush1.bf16.msra.mxu0 %v552
    %570 = vmatprep.subr.bf16.mxu0 0
    %571 = vmatpush1.bf16.msra.mxu0 %v551
    %572 = vmatprep.subr.bf16.mxu0 0
    %573 = vmatpush1.bf16.msra.mxu0 %v550
    %574 = vmatprep.subr.bf16.mxu0 0
    %575 = vmatpush1.bf16.msra.mxu0 %v549
    %576 = vmatprep.subr.bf16.mxu0 0
    %577 = vmatpush1.bf16.msra.mxu0 %v548
    %578 = vmatprep.subr.bf16.mxu0 0
    %579 = vmatpush1.bf16.msra.mxu0 %v547
    %580 = vmatprep.subr.bf16.mxu0 0
    %581 = vmatpush1.bf16.msra.mxu0 %v546
    %582 = vmatprep.subr.bf16.mxu0 0
    %583 = vmatpush1.bf16.msra.mxu0 %v545
    %584 = vmatprep.subr.bf16.mxu0 0
    %585 = vmatpush2.bf16.msra.mxu0 %v560
    %586 = vmatprep.subr.bf16.mxu0 0
    %587 = vmatpush2.bf16.msra.mxu0 %v559
    %588 = vmatprep.subr.bf16.mxu0 0
    %589 = vmatpush2.bf16.msra.mxu0 %v558
    %590 = vmatprep.subr.bf16.mxu0 0
    %591 = vmatpush2.bf16.msra.mxu0 %v557
    %592 = vmatprep.subr.bf16.mxu0 0
    %593 = vmatpush2.bf16.msra.mxu0 %v556
    %594 = vmatprep.subr.bf16.mxu0 0
    %595 = vmatpush2.bf16.msra.mxu0 %v555
    %596 = vmatprep.subr.bf16.mxu0 0
    %597 = vmatpush2.bf16.msra.mxu0 %v554
    %598 = vmatprep.subr.bf16.mxu0 0
    %599 = vmatpush2.bf16.msra.mxu0 %v553
    %600 = vmatprep.mubr.bf16.mxu0 %v512
    %601 = vmatmul.mubr.bf16.gmra.mxu0 %v511
    %v602 = vpop.f32.mrf.mxu0
    %v603 = vadd.f32 %v566, %v602
    %v604 = vpop.f32.mrf.mxu0
    %v605 = vpop.f32.mrf.mxu0
    %v606 = vpop.f32.mrf.mxu0
    %607 = vdwg.mxu0
    %608 = vst [vmem:[#allocation13] sm:$0xff] %v603
    // Predicated region
    $region62: #{projection_head.1} parent=1 // pred_check
      _
    $region63: #{projection_head.1} parent=1 // pred_check_branch
      %610 = sbr.rel (0) target = $region65
    $region64: #{projection_head.1} parent=1 // pred_region
      %s612 = ssub.s32 128, 128
      %613 = vsyncadd [#allocation4], %s612
      %s615 = sshll.u32 [#allocation13], 4
      %s616 = int_to_ptr.vmem [resolvable:$true] %s615
      %618 = dma.vmem_to_hbm [thread:$0]  %s616, 128, %s9, [#allocation4]
    $region65: #{projection_head.1} parent=1 // pred_fallthru
      _
    // Predicated region
    $region66: #{projection_head.1} parent=1 // pred_check
      _
    $region67: #{projection_head.1} parent=1 // pred_check_branch
      %620 = sbr.rel (0) target = $region69
    $region68: #{projection_head.1} parent=1 // pred_region
      %621 = dma.done [#allocation4], 128
    $region69: #{projection_head.1} parent=1 // pred_fallthru
      _
    %622 = vsyncpa [#allocation3], 1
    %623 = vsyncpa [#allocation6], 1
    %624 = vsyncpa [#allocation9], 1
    %625 = vsyncpa [#allocation12], 1
    %626 = vsyncpa [#allocation4], 1

</llo_original>
